<compile_context>
chip_gen: v6e
topology: v6e:2x2x1
jax: 0.10.0
libtpu: 0.0.40
codegen_flags: <defaults>
</compile_context>

<pallas_src>
import math
from functools import partial

import jax
import jax.numpy as jnp
from jax import lax
from jax.experimental import pallas as pl
from jax.experimental.pallas import tpu as pltpu


def _hsic_kernel(w_ref, f_ref, out_ref, *, assign_num):
    n = f_ref.shape[0]
    A = assign_num
    E = f_ref.shape[1] // A

    # ---- softmax(weights, axis=0), computed exactly once ----
    w = w_ref[...].astype(jnp.float32)                        # (n, 1)
    w_max = jnp.max(w, axis=0, keepdims=True)
    e = jnp.exp(w - w_max)
    sw = e / jnp.sum(e, axis=0, keepdims=True)                 # (n, 1)

    # lossp = softmax(weights).pow(2).sum()
    lossp = jnp.sum(sw * sw)

    # weighted features for all assignment slots at once
    wf = sw * f_ref[...].astype(jnp.float32)                   # (n, A*E)

    # ---- batched MXU / XLU work for every slot at once ----
    # sublane-stack the slot views: row a*n + i  <-  wf[i, a*E:(a+1)*E]
    x_stack = jnp.concatenate(
        [wf[:, a * E:(a + 1) * E] for a in range(A)], axis=0)  # (A*n, E)

    # one MXU push; only the A diagonal (n, n) blocks are consumed below
    xx_big = lax.dot_general(x_stack, x_stack, (((1,), (1,)), ((), ())),
                             preferred_element_type=jnp.float32)   # (A*n, A*n)

    y_stack = x_stack * x_stack                                 # (A*n, E)
    # 0.5*||x||^2 for every stacked row: one lane reduce (column layout) and
    # one tiny ones @ y^T push (row layout); -0.5 folded in so no (n,n)
    # scaling ops are needed later.
    half_col_all = 0.5 * jnp.sum(y_stack, axis=1, keepdims=True)   # (A*n, 1)
    ones_row = jnp.ones((1, E), jnp.float32)
    half_row_all = 0.5 * lax.dot_general(
        ones_row, y_stack, (((1,), (1,)), ((), ())),
        preferred_element_type=jnp.float32)                        # (1, A*n)

    # ---- per-slot centered Gram (vreg-resident) + running-sum identity ----
    inv_n = 1.0 / float(n)
    S = jnp.zeros((n, n), jnp.float32)
    self_sum = jnp.zeros((), jnp.float32)
    for a in range(A):
        lo = a * n
        xx = xx_big[lo:lo + n, lo:lo + n]                       # (n, n) = X_a X_a^T
        # RBF kernel, sigma = 1: exp(-0.5*(||xa||^2 + ||xb||^2 - 2 xa.xb))
        K = jnp.exp(xx - half_col_all[lo:lo + n, :]
                    - half_row_all[:, lo:lo + n])               # (n, n)
        # doubly center: C = K - colmean - rowmean + grandmean  (= H K H)
        cm = jnp.sum(K, axis=0, keepdims=True) * inv_n          # (1, n)
        rm = jnp.sum(K, axis=1, keepdims=True) * inv_n          # (n, 1)
        gm = jnp.sum(cm, axis=1, keepdims=True) * inv_n         # (1, 1)
        C = K - cm - rm + gm
        S = S + C
        self_sum = self_sum + jnp.sum(C * C)

    # sum_{i<j} trace(KH_i @ LH_j) = sum_{i<j} <C_i, C_j>
    #                             = 0.5 * (<S, S> - sum_i <C_i, C_i>)
    pair_sum = 0.5 * (jnp.sum(S * S) - self_sum)
    lossb = pair_sum * (1.0 / float((n - 1) * (n - 1)))

    # single merged (1, 2) store: [lossb, lossp] (select avoids tiny-concat)
    lane = lax.broadcasted_iota(jnp.int32, (1, 2), 1)
    out_ref[...] = jnp.where(lane == 0, lossb, lossp)


def hsic_weight_pallas(features, weights, assign_num, embedding_size):
    n, tot = features.shape
    assert tot == assign_num * embedding_size
    assert weights.shape == (n, 1)
    assert n > 1, "HSIC biased estimator needs n > 1 (division by (n-1)^2)"
    assert assign_num >= 1

    grid_spec = pltpu.PrefetchScalarGridSpec(
        num_scalar_prefetch=0,
        grid=(1,),
        in_specs=[
            pl.BlockSpec((n, 1), lambda p: (0, 0)),       # weights (whole array)
            pl.BlockSpec((n, tot), lambda p: (0, 0)),     # features (whole array)
        ],
        out_specs=pl.BlockSpec((1, 2), lambda p: (0, 0)),  # [lossb, lossp]
    )

    out = pl.pallas_call(
        partial(_hsic_kernel, assign_num=assign_num),
        grid_spec=grid_spec,
        out_shape=jax.ShapeDtypeStruct((1, 2), jnp.float32),
        compiler_params=pltpu.CompilerParams(
            dimension_semantics=("arbitrary",)),
    )(weights, features)

    return out[0, 0], out[0, 1]


def hsic_weight_forward(features, weights, assign_num, embedding_size,
                        lambdap, global_epoch, lambda_decay_rate,
                        lambda_decay_epoch, min_lambda_times):
    """Mirrors HSIC_weight.forward (all_features=cfeatures, all_weights=weights)."""
    lossb, lossp = hsic_weight_pallas(features, weights, assign_num,
                                      embedding_size)
    # scalar epoch-schedule bookkeeping stays in plain Python (as in PyTorch)
    lam = lambdap * max(lambda_decay_rate ** (global_epoch // lambda_decay_epoch),
                        min_lambda_times)
    lossg = 1000.0 * lossb / lam + lossp
    return lossg, lossb


def _reference(features, weights, assign_num, embedding_size,
               lambdap, global_epoch, lambda_decay_rate,
               lambda_decay_epoch, min_lambda_times):
    n = features.shape[0]
    sw = jax.nn.softmax(weights, axis=0)

    def rbf(X):
        XX = X @ X.T
        sq = jnp.diag(XX)
        X_L2 = -2.0 * XX + sq[:, None] + sq[None, :]
        return jnp.exp(-0.5 * X_L2)

    lossb = jnp.float32(0.0)
    for i in range(assign_num - 1):
        for j in range(i + 1, assign_num):
            f1 = features[:, i * embedding_size:(i + 1) * embedding_size]
            f2 = features[:, j * embedding_size:(j + 1) * embedding_size]
            K = rbf(sw * f1)
            L = rbf(sw * f2)
            KH = K - K.mean(0, keepdims=True)
            LH = L - L.mean(0, keepdims=True)
            lossb = lossb + jnp.trace(KH @ LH / (n - 1) ** 2)
    lossp = jnp.sum(sw ** 2)
    lam = lambdap * max(lambda_decay_rate ** (global_epoch // lambda_decay_epoch),
                        min_lambda_times)
    lossg = 1000.0 * lossb / lam + lossp
    return lossg, lossb


if __name__ == "__main__":
    # Module config (small, layout-friendly shapes).
    n = 8                  # number of samples / graphs
    embedding_size = 128   # per-assignment embedding width
    assign_num = 4         # number of assignment blocks
    key = jax.random.PRNGKey(0)

    # cfeatures -> all_features  (deterministic synthetic data)
    features = jax.random.normal(
        key, (n, assign_num * embedding_size), dtype=jnp.float32)
    # nn.Parameter(torch.ones((n, 1)))
    weights = jnp.ones((n, 1), dtype=jnp.float32)

    # forward(...) scalar arguments
    lambdap = 1.0
    global_epoch = 5
    lambda_decay_rate = 0.9
    lambda_decay_epoch = 2
    min_lambda_times = 0.01

    lossg, lossb = hsic_weight_forward(
        features, weights, assign_num, embedding_size,
        lambdap, global_epoch, lambda_decay_rate,
        lambda_decay_epoch, min_lambda_times)
    jax.block_until_ready((lossg, lossb))

    ref_g, ref_b = _reference(
        features, weights, assign_num, embedding_size,
        lambdap, global_epoch, lambda_decay_rate,
        lambda_decay_epoch, min_lambda_times)

    assert math.isfinite(float(lossg)) and math.isfinite(float(lossb))
    assert abs(float(lossb) - float(ref_b)) <= 1e-5 + 1e-4 * abs(float(ref_b))
    assert abs(float(lossg) - float(ref_g)) <= 1e-4 + 1e-4 * abs(float(ref_g))

    print("KERNEL_OK")
</pallas_src>

<mosaic_0001>
module attributes {stable_mosaic.version = 11 : i64} {
  func.func @_hsic_kernel(%arg0: i32, %arg1: memref<8x1xf32, #tpu.memory_space<vmem>>, %arg2: memref<8x512xf32, #tpu.memory_space<vmem>>, %arg3: memref<1x2xf32, #tpu.memory_space<vmem>>) attributes {dimension_semantics = [#tpu.dimension_semantics<arbitrary>], iteration_bounds = array<i64: 1>, scalar_prefetch = 0 : i64, scratch_operands = 0 : i64, tpu.core_type = #tpu.core_type<tc>, window_params = [{pipeline_mode = #tpu.pipeline_mode<synchronous>, transform_indices = @transform_0, window_bounds = array<i64: 8, 1>}, {pipeline_mode = #tpu.pipeline_mode<synchronous>, transform_indices = @transform_1, window_bounds = array<i64: 8, 512>}, {pipeline_mode = #tpu.pipeline_mode<synchronous>, transform_indices = @transform_2, window_bounds = array<i64: 1, 2>}]} {
    %c0 = arith.constant 0 : index
    %c0_0 = arith.constant 0 : index
    %0 = vector.load %arg1[%c0, %c0_0] : memref<8x1xf32, #tpu.memory_space<vmem>>, vector<8x1xf32>
    %cst = arith.constant dense<0xFF800000> : vector<1xf32>
    %1 = vector.multi_reduction <maximumf>, %0, %cst [0] : vector<8x1xf32> to vector<1xf32>
    %2 = vector.shape_cast %1 : vector<1xf32> to vector<1x1xf32>
    %3 = vector.broadcast %2 : vector<1x1xf32> to vector<8x1xf32>
    %4 = arith.subf %0, %3 : vector<8x1xf32>
    %5 = math.exp %4 : vector<8x1xf32>
    %cst_1 = arith.constant dense<0.000000e+00> : vector<1xf32>
    %6 = vector.multi_reduction <add>, %5, %cst_1 [0] : vector<8x1xf32> to vector<1xf32>
    %7 = vector.shape_cast %6 : vector<1xf32> to vector<1x1xf32>
    %8 = vector.broadcast %7 : vector<1x1xf32> to vector<8x1xf32>
    %9 = arith.divf %5, %8 : vector<8x1xf32>
    %10 = arith.mulf %9, %9 : vector<8x1xf32>
    %11 = vector.shape_cast %10 : vector<8x1xf32> to vector<1x8x1xf32>
    %cst_2 = arith.constant dense<0.000000e+00> : vector<1xf32>
    %12 = vector.multi_reduction <add>, %11, %cst_2 [1, 2] : vector<1x8x1xf32> to vector<1xf32>
    %13 = vector.shape_cast %12 : vector<1xf32> to vector<1x1x1xf32>
    %14 = vector.extract %13[0, 0, 0] : f32 from vector<1x1x1xf32>
    %c0_3 = arith.constant 0 : index
    %c0_4 = arith.constant 0 : index
    %15 = vector.load %arg2[%c0_3, %c0_4] : memref<8x512xf32, #tpu.memory_space<vmem>>, vector<8x512xf32>
    %16 = vector.broadcast %9 : vector<8x1xf32> to vector<8x512xf32>
    %17 = arith.mulf %16, %15 : vector<8x512xf32>
    %18 = vector.extract_strided_slice %17 {offsets = [0, 0], sizes = [8, 128], strides = [1, 1]} : vector<8x512xf32> to vector<8x128xf32>
    %19 = vector.extract_strided_slice %17 {offsets = [0, 128], sizes = [8, 128], strides = [1, 1]} : vector<8x512xf32> to vector<8x128xf32>
    %20 = vector.extract_strided_slice %17 {offsets = [0, 256], sizes = [8, 128], strides = [1, 1]} : vector<8x512xf32> to vector<8x128xf32>
    %21 = vector.extract_strided_slice %17 {offsets = [0, 384], sizes = [8, 128], strides = [1, 1]} : vector<8x512xf32> to vector<8x128xf32>
    %22 = tpu.concatenate %18, %19, %20, %21 in 0 : vector<8x128xf32>, vector<8x128xf32>, vector<8x128xf32>, vector<8x128xf32> -> vector<32x128xf32>
    %cst_5 = arith.constant dense<0.000000e+00> : vector<32x32xf32>
    %23 = tpu.matmul %22, %22, %cst_5 {dimension_numbers = #tpu.dot_dimension_numbers<[1], [1], [0], [0], [0, 0, 1, 0], [], []>} : vector<32x128xf32>, vector<32x128xf32>, vector<32x32xf32> -> vector<32x32xf32>
    %24 = arith.mulf %22, %22 : vector<32x128xf32>
    %cst_6 = arith.constant dense<0.000000e+00> : vector<32xf32>
    %25 = vector.multi_reduction <add>, %24, %cst_6 [1] : vector<32x128xf32> to vector<32xf32>
    %26 = vector.shape_cast %25 : vector<32xf32> to vector<32x1xf32>
    %cst_7 = arith.constant 5.000000e-01 : f32
    %27 = vector.broadcast %cst_7 : f32 to vector<32x1xf32>
    %28 = arith.mulf %27, %26 : vector<32x1xf32>
    %cst_8 = arith.constant 1.000000e+00 : f32
    %29 = vector.broadcast %cst_8 : f32 to vector<1x128xf32>
    %cst_9 = arith.constant dense<0.000000e+00> : vector<1x32xf32>
    %30 = tpu.matmul %29, %24, %cst_9 {dimension_numbers = #tpu.dot_dimension_numbers<[1], [1], [0], [0], [0, 0, 1, 0], [], []>} : vector<1x128xf32>, vector<32x128xf32>, vector<1x32xf32> -> vector<1x32xf32>
    %cst_10 = arith.constant 5.000000e-01 : f32
    %31 = vector.broadcast %cst_10 : f32 to vector<1x32xf32>
    %32 = arith.mulf %31, %30 : vector<1x32xf32>
    %cst_11 = arith.constant 0.000000e+00 : f32
    %33 = vector.broadcast %cst_11 : f32 to vector<8x8xf32>
    %34 = vector.extract_strided_slice %23 {offsets = [0, 0], sizes = [8, 8], strides = [1, 1]} : vector<32x32xf32> to vector<8x8xf32>
    %35 = vector.extract_strided_slice %28 {offsets = [0, 0], sizes = [8, 1], strides = [1, 1]} : vector<32x1xf32> to vector<8x1xf32>
    %36 = vector.broadcast %35 : vector<8x1xf32> to vector<8x8xf32>
    %37 = arith.subf %34, %36 : vector<8x8xf32>
    %38 = vector.extract_strided_slice %32 {offsets = [0, 0], sizes = [1, 8], strides = [1, 1]} : vector<1x32xf32> to vector<1x8xf32>
    %39 = vector.broadcast %38 : vector<1x8xf32> to vector<8x8xf32>
    %40 = arith.subf %37, %39 : vector<8x8xf32>
    %41 = math.exp %40 : vector<8x8xf32>
    %cst_12 = arith.constant dense<0.000000e+00> : vector<8xf32>
    %42 = vector.multi_reduction <add>, %41, %cst_12 [0] : vector<8x8xf32> to vector<8xf32>
    %43 = vector.shape_cast %42 : vector<8xf32> to vector<1x8xf32>
    %cst_13 = arith.constant 1.250000e-01 : f32
    %44 = vector.broadcast %cst_13 : f32 to vector<1x8xf32>
    %45 = arith.mulf %43, %44 : vector<1x8xf32>
    %cst_14 = arith.constant dense<0.000000e+00> : vector<8xf32>
    %46 = vector.multi_reduction <add>, %41, %cst_14 [1] : vector<8x8xf32> to vector<8xf32>
    %47 = vector.shape_cast %46 : vector<8xf32> to vector<8x1xf32>
    %cst_15 = arith.constant 1.250000e-01 : f32
    %48 = vector.broadcast %cst_15 : f32 to vector<8x1xf32>
    %49 = arith.mulf %47, %48 : vector<8x1xf32>
    %cst_16 = arith.constant dense<0.000000e+00> : vector<1xf32>
    %50 = vector.multi_reduction <add>, %45, %cst_16 [1] : vector<1x8xf32> to vector<1xf32>
    %51 = vector.shape_cast %50 : vector<1xf32> to vector<1x1xf32>
    %cst_17 = arith.constant 1.250000e-01 : f32
    %52 = vector.broadcast %cst_17 : f32 to vector<1x1xf32>
    %53 = arith.mulf %51, %52 : vector<1x1xf32>
    %54 = vector.broadcast %45 : vector<1x8xf32> to vector<8x8xf32>
    %55 = arith.subf %41, %54 : vector<8x8xf32>
    %56 = vector.broadcast %49 : vector<8x1xf32> to vector<8x8xf32>
    %57 = arith.subf %55, %56 : vector<8x8xf32>
    %58 = vector.broadcast %53 : vector<1x1xf32> to vector<8x8xf32>
    %59 = arith.addf %57, %58 : vector<8x8xf32>
    %60 = arith.addf %33, %59 : vector<8x8xf32>
    %61 = arith.mulf %59, %59 : vector<8x8xf32>
    %62 = vector.shape_cast %61 : vector<8x8xf32> to vector<1x8x8xf32>
    %cst_18 = arith.constant dense<0.000000e+00> : vector<1xf32>
    %63 = vector.multi_reduction <add>, %62, %cst_18 [1, 2] : vector<1x8x8xf32> to vector<1xf32>
    %64 = vector.shape_cast %63 : vector<1xf32> to vector<1x1x1xf32>
    %65 = vector.extract %64[0, 0, 0] : f32 from vector<1x1x1xf32>
    %cst_19 = arith.constant 0.000000e+00 : f32
    %66 = arith.addf %cst_19, %65 : f32
    %67 = vector.extract_strided_slice %23 {offsets = [8, 8], sizes = [8, 8], strides = [1, 1]} : vector<32x32xf32> to vector<8x8xf32>
    %68 = vector.extract_strided_slice %28 {offsets = [8, 0], sizes = [8, 1], strides = [1, 1]} : vector<32x1xf32> to vector<8x1xf32>
    %69 = vector.broadcast %68 : vector<8x1xf32> to vector<8x8xf32>
    %70 = arith.subf %67, %69 : vector<8x8xf32>
    %71 = vector.extract_strided_slice %32 {offsets = [0, 8], sizes = [1, 8], strides = [1, 1]} : vector<1x32xf32> to vector<1x8xf32>
    %72 = vector.broadcast %71 : vector<1x8xf32> to vector<8x8xf32>
    %73 = arith.subf %70, %72 : vector<8x8xf32>
    %74 = math.exp %73 : vector<8x8xf32>
    %cst_20 = arith.constant dense<0.000000e+00> : vector<8xf32>
    %75 = vector.multi_reduction <add>, %74, %cst_20 [0] : vector<8x8xf32> to vector<8xf32>
    %76 = vector.shape_cast %75 : vector<8xf32> to vector<1x8xf32>
    %cst_21 = arith.constant 1.250000e-01 : f32
    %77 = vector.broadcast %cst_21 : f32 to vector<1x8xf32>
    %78 = arith.mulf %76, %77 : vector<1x8xf32>
    %cst_22 = arith.constant dense<0.000000e+00> : vector<8xf32>
    %79 = vector.multi_reduction <add>, %74, %cst_22 [1] : vector<8x8xf32> to vector<8xf32>
    %80 = vector.shape_cast %79 : vector<8xf32> to vector<8x1xf32>
    %cst_23 = arith.constant 1.250000e-01 : f32
    %81 = vector.broadcast %cst_23 : f32 to vector<8x1xf32>
    %82 = arith.mulf %80, %81 : vector<8x1xf32>
    %cst_24 = arith.constant dense<0.000000e+00> : vector<1xf32>
    %83 = vector.multi_reduction <add>, %78, %cst_24 [1] : vector<1x8xf32> to vector<1xf32>
    %84 = vector.shape_cast %83 : vector<1xf32> to vector<1x1xf32>
    %cst_25 = arith.constant 1.250000e-01 : f32
    %85 = vector.broadcast %cst_25 : f32 to vector<1x1xf32>
    %86 = arith.mulf %84, %85 : vector<1x1xf32>
    %87 = vector.broadcast %78 : vector<1x8xf32> to vector<8x8xf32>
    %88 = arith.subf %74, %87 : vector<8x8xf32>
    %89 = vector.broadcast %82 : vector<8x1xf32> to vector<8x8xf32>
    %90 = arith.subf %88, %89 : vector<8x8xf32>
    %91 = vector.broadcast %86 : vector<1x1xf32> to vector<8x8xf32>
    %92 = arith.addf %90, %91 : vector<8x8xf32>
    %93 = arith.addf %60, %92 : vector<8x8xf32>
    %94 = arith.mulf %92, %92 : vector<8x8xf32>
    %95 = vector.shape_cast %94 : vector<8x8xf32> to vector<1x8x8xf32>
    %cst_26 = arith.constant dense<0.000000e+00> : vector<1xf32>
    %96 = vector.multi_reduction <add>, %95, %cst_26 [1, 2] : vector<1x8x8xf32> to vector<1xf32>
    %97 = vector.shape_cast %96 : vector<1xf32> to vector<1x1x1xf32>
    %98 = vector.extract %97[0, 0, 0] : f32 from vector<1x1x1xf32>
    %99 = arith.addf %66, %98 : f32
    %100 = vector.extract_strided_slice %23 {offsets = [16, 16], sizes = [8, 8], strides = [1, 1]} : vector<32x32xf32> to vector<8x8xf32>
    %101 = vector.extract_strided_slice %28 {offsets = [16, 0], sizes = [8, 1], strides = [1, 1]} : vector<32x1xf32> to vector<8x1xf32>
    %102 = vector.broadcast %101 : vector<8x1xf32> to vector<8x8xf32>
    %103 = arith.subf %100, %102 : vector<8x8xf32>
    %104 = vector.extract_strided_slice %32 {offsets = [0, 16], sizes = [1, 8], strides = [1, 1]} : vector<1x32xf32> to vector<1x8xf32>
    %105 = vector.broadcast %104 : vector<1x8xf32> to vector<8x8xf32>
    %106 = arith.subf %103, %105 : vector<8x8xf32>
    %107 = math.exp %106 : vector<8x8xf32>
    %cst_27 = arith.constant dense<0.000000e+00> : vector<8xf32>
    %108 = vector.multi_reduction <add>, %107, %cst_27 [0] : vector<8x8xf32> to vector<8xf32>
    %109 = vector.shape_cast %108 : vector<8xf32> to vector<1x8xf32>
    %cst_28 = arith.constant 1.250000e-01 : f32
    %110 = vector.broadcast %cst_28 : f32 to vector<1x8xf32>
    %111 = arith.mulf %109, %110 : vector<1x8xf32>
    %cst_29 = arith.constant dense<0.000000e+00> : vector<8xf32>
    %112 = vector.multi_reduction <add>, %107, %cst_29 [1] : vector<8x8xf32> to vector<8xf32>
    %113 = vector.shape_cast %112 : vector<8xf32> to vector<8x1xf32>
    %cst_30 = arith.constant 1.250000e-01 : f32
    %114 = vector.broadcast %cst_30 : f32 to vector<8x1xf32>
    %115 = arith.mulf %113, %114 : vector<8x1xf32>
    %cst_31 = arith.constant dense<0.000000e+00> : vector<1xf32>
    %116 = vector.multi_reduction <add>, %111, %cst_31 [1] : vector<1x8xf32> to vector<1xf32>
    %117 = vector.shape_cast %116 : vector<1xf32> to vector<1x1xf32>
    %cst_32 = arith.constant 1.250000e-01 : f32
    %118 = vector.broadcast %cst_32 : f32 to vector<1x1xf32>
    %119 = arith.mulf %117, %118 : vector<1x1xf32>
    %120 = vector.broadcast %111 : vector<1x8xf32> to vector<8x8xf32>
    %121 = arith.subf %107, %120 : vector<8x8xf32>
    %122 = vector.broadcast %115 : vector<8x1xf32> to vector<8x8xf32>
    %123 = arith.subf %121, %122 : vector<8x8xf32>
    %124 = vector.broadcast %119 : vector<1x1xf32> to vector<8x8xf32>
    %125 = arith.addf %123, %124 : vector<8x8xf32>
    %126 = arith.addf %93, %125 : vector<8x8xf32>
    %127 = arith.mulf %125, %125 : vector<8x8xf32>
    %128 = vector.shape_cast %127 : vector<8x8xf32> to vector<1x8x8xf32>
    %cst_33 = arith.constant dense<0.000000e+00> : vector<1xf32>
    %129 = vector.multi_reduction <add>, %128, %cst_33 [1, 2] : vector<1x8x8xf32> to vector<1xf32>
    %130 = vector.shape_cast %129 : vector<1xf32> to vector<1x1x1xf32>
    %131 = vector.extract %130[0, 0, 0] : f32 from vector<1x1x1xf32>
    %132 = arith.addf %99, %131 : f32
    %133 = vector.extract_strided_slice %23 {offsets = [24, 24], sizes = [8, 8], strides = [1, 1]} : vector<32x32xf32> to vector<8x8xf32>
    %134 = vector.extract_strided_slice %28 {offsets = [24, 0], sizes = [8, 1], strides = [1, 1]} : vector<32x1xf32> to vector<8x1xf32>
    %135 = vector.broadcast %134 : vector<8x1xf32> to vector<8x8xf32>
    %136 = arith.subf %133, %135 : vector<8x8xf32>
    %137 = vector.extract_strided_slice %32 {offsets = [0, 24], sizes = [1, 8], strides = [1, 1]} : vector<1x32xf32> to vector<1x8xf32>
    %138 = vector.broadcast %137 : vector<1x8xf32> to vector<8x8xf32>
    %139 = arith.subf %136, %138 : vector<8x8xf32>
    %140 = math.exp %139 : vector<8x8xf32>
    %cst_34 = arith.constant dense<0.000000e+00> : vector<8xf32>
    %141 = vector.multi_reduction <add>, %140, %cst_34 [0] : vector<8x8xf32> to vector<8xf32>
    %142 = vector.shape_cast %141 : vector<8xf32> to vector<1x8xf32>
    %cst_35 = arith.constant 1.250000e-01 : f32
    %143 = vector.broadcast %cst_35 : f32 to vector<1x8xf32>
    %144 = arith.mulf %142, %143 : vector<1x8xf32>
    %cst_36 = arith.constant dense<0.000000e+00> : vector<8xf32>
    %145 = vector.multi_reduction <add>, %140, %cst_36 [1] : vector<8x8xf32> to vector<8xf32>
    %146 = vector.shape_cast %145 : vector<8xf32> to vector<8x1xf32>
    %cst_37 = arith.constant 1.250000e-01 : f32
    %147 = vector.broadcast %cst_37 : f32 to vector<8x1xf32>
    %148 = arith.mulf %146, %147 : vector<8x1xf32>
    %cst_38 = arith.constant dense<0.000000e+00> : vector<1xf32>
    %149 = vector.multi_reduction <add>, %144, %cst_38 [1] : vector<1x8xf32> to vector<1xf32>
    %150 = vector.shape_cast %149 : vector<1xf32> to vector<1x1xf32>
    %cst_39 = arith.constant 1.250000e-01 : f32
    %151 = vector.broadcast %cst_39 : f32 to vector<1x1xf32>
    %152 = arith.mulf %150, %151 : vector<1x1xf32>
    %153 = vector.broadcast %144 : vector<1x8xf32> to vector<8x8xf32>
    %154 = arith.subf %140, %153 : vector<8x8xf32>
    %155 = vector.broadcast %148 : vector<8x1xf32> to vector<8x8xf32>
    %156 = arith.subf %154, %155 : vector<8x8xf32>
    %157 = vector.broadcast %152 : vector<1x1xf32> to vector<8x8xf32>
    %158 = arith.addf %156, %157 : vector<8x8xf32>
    %159 = arith.addf %126, %158 : vector<8x8xf32>
    %160 = arith.mulf %158, %158 : vector<8x8xf32>
    %161 = vector.shape_cast %160 : vector<8x8xf32> to vector<1x8x8xf32>
    %cst_40 = arith.constant dense<0.000000e+00> : vector<1xf32>
    %162 = vector.multi_reduction <add>, %161, %cst_40 [1, 2] : vector<1x8x8xf32> to vector<1xf32>
    %163 = vector.shape_cast %162 : vector<1xf32> to vector<1x1x1xf32>
    %164 = vector.extract %163[0, 0, 0] : f32 from vector<1x1x1xf32>
    %165 = arith.addf %132, %164 : f32
    %166 = arith.mulf %159, %159 : vector<8x8xf32>
    %167 = vector.shape_cast %166 : vector<8x8xf32> to vector<1x8x8xf32>
    %cst_41 = arith.constant dense<0.000000e+00> : vector<1xf32>
    %168 = vector.multi_reduction <add>, %167, %cst_41 [1, 2] : vector<1x8x8xf32> to vector<1xf32>
    %169 = vector.shape_cast %168 : vector<1xf32> to vector<1x1x1xf32>
    %170 = vector.extract %169[0, 0, 0] : f32 from vector<1x1x1xf32>
    %171 = arith.subf %170, %165 : f32
    %cst_42 = arith.constant 5.000000e-01 : f32
    %172 = arith.mulf %cst_42, %171 : f32
    %cst_43 = arith.constant 0.0204081628 : f32
    %173 = arith.mulf %172, %cst_43 : f32
    %174 = tpu.iota {dimensions = array<i32: 1>} : vector<1x2xi32>
    %c0_i32 = arith.constant 0 : i32
    %175 = vector.broadcast %c0_i32 : i32 to vector<1x2xi32>
    %176 = arith.cmpi eq, %174, %175 : vector<1x2xi32>
    %177 = vector.broadcast %173 : f32 to vector<1x2xf32>
    %178 = vector.broadcast %14 : f32 to vector<1x2xf32>
    %179 = arith.select %176, %177, %178 : vector<1x2xi1>, vector<1x2xf32>
    %c0_44 = arith.constant 0 : index
    %c0_45 = arith.constant 0 : index
    %180 = vector.load %arg3[%c0_44, %c0_45] : memref<1x2xf32, #tpu.memory_space<vmem>>, vector<1x2xf32>
    tpu.vector_store %arg3[%c0_44, %c0_45], %179 {strides = array<i32>} : memref<1x2xf32, #tpu.memory_space<vmem>>, vector<1x2xf32>,
    return
  }
  func.func @transform_0(%arg0: i32) -> (i32, i32) {
    %c0_i32 = arith.constant 0 : i32
    %c0_i32_0 = arith.constant 0 : i32
    %c0_i32_1 = arith.constant 0 : i32
    return %c0_i32, %c0_i32_0 : i32, i32
  }
  func.func @transform_1(%arg0: i32) -> (i32, i32) {
    %c0_i32 = arith.constant 0 : i32
    %c0_i32_0 = arith.constant 0 : i32
    %c0_i32_1 = arith.constant 0 : i32
    return %c0_i32, %c0_i32_0 : i32, i32
  }
  func.func @transform_2(%arg0: i32) -> (i32, i32) {
    %c0_i32 = arith.constant 0 : i32
    %c0_i32_0 = arith.constant 0 : i32
    %c0_i32_1 = arith.constant 0 : i32
    return %c0_i32, %c0_i32_0 : i32, i32
  }
}

</mosaic_0001>

<llo_original>
// kernel: tpu_custom_call.1
$region0: #{tpu_custom_call.1}
  #allocation0 [shape = 'u32[]', space=smem, size = 0x4, offset = 0x4, fixed_abs, tag = 'smem constant byte address 0x4 - core index']
  #allocation1 [shape = 'u32[144,128]{1,0:T(1,128)}', space=vmem, size = 0x12000, scoped, tag = 'internal scratch']
  %s0 = inlined_call_operand.vmem [shape: f32[8,1], index: 0, kind: input, shape index: {}]
  %s1 = inlined_call_operand.hbm [shape: f32[8,512], index: 1, kind: input, shape index: {}]
  %s2 = inlined_call_operand.hbm [shape: f32[1,2], index: 2, kind: output, shape index: {}]
  %s3 = sld [smem:[#allocation0]]
  $region22: #{tpu_custom_call.1} parent=0
    _
  %s5 = ssub.s32 1, %s3
  %s6 = scalar_select 0, %s5, %s3
  $region1: #{tpu_custom_call.1} parent=0
    #allocation2 [shape = 'u8[16384]{0}', space=vmem, size = 0x4000, scoped, tag = 'input window, operand 1, single buffered']
    #allocation3 [shape = 's32[1]{0}', space=sflag, size = 0x4, scoped, tag = 'scoped memory for tpu_custom_call.1']
    #allocation4 [shape = 's32[1]{0}', space=sflag, size = 0x4, scoped, tag = 'scoped memory for tpu_custom_call.1']
    #allocation5 [shape = 'u8[512]{0}', space=vmem, size = 0x400, scoped, tag = 'output window, operand 0, single buffered']
    %7 = vsyncpa [#allocation3], 0
    %8 = vsyncpa [#allocation4], 0
    // Predicated region
    $region2: #{tpu_custom_call.1} parent=1 // pred_check
      _
    $region3: #{tpu_custom_call.1} parent=1 // pred_check_branch
      %10 = sbr.rel (0) target = $region5
    $region4: #{tpu_custom_call.1} parent=1 // pred_region
      _
    $region5: #{tpu_custom_call.1} parent=1 // pred_fallthru
      _
    // Predicated region
    $region6: #{tpu_custom_call.1} parent=1 // pred_check
      _
    $region7: #{tpu_custom_call.1} parent=1 // pred_check_branch
      %12 = sbr.rel (0) target = $region9
    $region8: #{tpu_custom_call.1} parent=1 // pred_region
      %s14 = ssub.s32 512, 512
      %15 = vsyncadd [#allocation3], %s14
      %s17 = sshll.u32 [#allocation2], 4
      %s18 = int_to_ptr.vmem [resolvable:$true] %s17
      %20 = dma.hbm_to_vmem [thread:$0]  %s1, 512, %s18, [#allocation3]
    $region9: #{tpu_custom_call.1} parent=1 // pred_fallthru
      _
    // Predicated region
    $region10: #{tpu_custom_call.1} parent=1 // pred_check
      _
    $region11: #{tpu_custom_call.1} parent=1 // pred_check_branch
      %22 = sbr.rel (0) target = $region13
    $region12: #{tpu_custom_call.1} parent=1 // pred_region
      %23 = dma.done [#allocation3], 512
    $region13: #{tpu_custom_call.1} parent=1 // pred_fallthru
      _
    %v24 = vld [vmem:[%s0] sm:$0xff]
    %vm25 = vcmask 7168
    %v26 = vsel %vm25, %v24, -inf
    %v27 = vrot.slane %v26, 4
    %v28 = vmax.f32 %v26, %v27
    %v29 = vrot.slane %v28, 2
    %v30 = vmax.f32 %v28, %v29
    %v31 = vrot.slane %v30, 1
    %v32 = vmax.f32 %v30, %v31
    %v33 = vsub.f32 %v24, %v32
    %v34 = vmul.f32 %v33, 1.442695
    %v35 = vpow.pop %v34
    %v36 = vsel %vm25, %v35, 0.0
    %v37 = vrot.slane %v36, 4
    %v38 = vadd.f32 %v36, %v37
    %v39 = vrot.slane %v38, 2
    %v40 = vadd.f32 %v38, %v39
    %v41 = vrot.slane %v40, 1
    %v42 = vadd.f32 %v40, %v41
    %v43 = vrcp.pop %v42
    %v44 = vmul.f32 %v35, %v43
    %v45 = vmul.f32 %v44, %v44
    %v46 = vsel %vm25, %v45, 0.0
    %47 = vadd.xlane.f32.xlu0 %v46
    %v48 = vpop.xlane.xlu0 %47
    %v49 = vrot.slane %v48, 4
    %v50 = vadd.f32 %v48, %v49
    %v51 = vrot.slane %v50, 2
    %v52 = vadd.f32 %v50, %v51
    %v53 = vrot.slane %v52, 1
    %v54 = vadd.f32 %v52, %v53
    %s55 = vtos %v54
    %v56 = vld [vmem:[#allocation2] sm:$0xff]
    %v57 = vld [vmem:[#allocation2 + $0x8] sm:$0xff]
    %v58 = vld [vmem:[#allocation2 + $0x10] sm:$0xff]
    %v59 = vld [vmem:[#allocation2 + $0x18] sm:$0xff]
    %61 = vset.pattern.permute.xlu0 0
    %62 = vperm.xlu0 %61, %v44
    %v63 = vpop.permute.xlu0 %62
    %v65 = vmul.f32 %v63, %v56
    %v66 = vmul.f32 %v63, %v57
    %v67 = vmul.f32 %v63, %v58
    %v68 = vmul.f32 %v63, %v59
    %69 = vmatprep.subr.mxu0 0.0
    %70 = vmatpush1.xpose.msra.mxu0 0.0
    %71 = vmatprep.subr.mxu0 0.0
    %72 = vmatpush1.xpose.msra.mxu0 0.0
    %73 = vmatprep.subr.mxu0 0.0
    %74 = vmatpush1.xpose.msra.mxu0 0.0
    %75 = vmatprep.subr.mxu0 0.0
    %76 = vmatpush1.xpose.msra.mxu0 0.0
    %77 = vmatprep.subr.mxu0 0.0
    %78 = vmatpush1.xpose.msra.mxu0 0.0
    %79 = vmatprep.subr.mxu0 0.0
    %80 = vmatpush1.xpose.msra.mxu0 0.0
    %81 = vmatprep.subr.mxu0 0.0
    %82 = vmatpush1.xpose.msra.mxu0 0.0
    %83 = vmatprep.subr.mxu0 0.0
    %84 = vmatpush1.xpose.msra.mxu0 0.0
    %85 = vmatprep.subr.mxu0 0.0
    %86 = vmatpush1.xpose.msra.mxu0 0.0
    %87 = vmatprep.subr.mxu0 0.0
    %88 = vmatpush1.xpose.msra.mxu0 0.0
    %89 = vmatprep.subr.mxu0 0.0
    %90 = vmatpush1.xpose.msra.mxu0 0.0
    %91 = vmatprep.subr.mxu0 0.0
    %92 = vmatpush1.xpose.msra.mxu0 0.0
    %93 = vmatprep.subr.mxu0 0.0
    %94 = vmatpush1.xpose.msra.mxu0 %v68
    %95 = vmatprep.subr.mxu0 0.0
    %96 = vmatpush1.xpose.msra.mxu0 %v67
    %97 = vmatprep.subr.mxu0 0.0
    %98 = vmatpush1.xpose.msra.mxu0 %v66
    %99 = vmatprep.subr.mxu0 0.0
    %100 = vmatpush1.xpose.msra.mxu0 %v65
    %101 = vmatprep.subr.mxu0 0.0
    %102 = vmatpush2.xpose.msra.mxu0 0.0
    %103 = vmatprep.subr.mxu0 0.0
    %104 = vmatpush2.xpose.msra.mxu0 0.0
    %105 = vmatprep.subr.mxu0 0.0
    %106 = vmatpush2.xpose.msra.mxu0 0.0
    %107 = vmatprep.subr.mxu0 0.0
    %108 = vmatpush2.xpose.msra.mxu0 0.0
    %109 = vmatprep.subr.mxu0 0.0
    %110 = vmatpush2.xpose.msra.mxu0 0.0
    %111 = vmatprep.subr.mxu0 0.0
    %112 = vmatpush2.xpose.msra.mxu0 0.0
    %113 = vmatprep.subr.mxu0 0.0
    %114 = vmatpush2.xpose.msra.mxu0 0.0
    %115 = vmatprep.subr.mxu0 0.0
    %116 = vmatpush2.xpose.msra.mxu0 0.0
    %117 = vmatprep.subr.mxu0 0.0
    %118 = vmatpush2.xpose.msra.mxu0 0.0
    %119 = vmatprep.subr.mxu0 0.0
    %120 = vmatpush2.xpose.msra.mxu0 0.0
    %121 = vmatprep.subr.mxu0 0.0
    %122 = vmatpush2.xpose.msra.mxu0 0.0
    %123 = vmatprep.subr.mxu0 0.0
    %124 = vmatpush2.xpose.msra.mxu0 0.0
    %125 = vmatprep.subr.mxu0 0.0
    %126 = vmatpush2.xpose.msra.mxu0 0.0
    %127 = vmatprep.subr.mxu0 0.0
    %128 = vmatpush2.xpose.msra.mxu0 0.0
    %129 = vmatprep.subr.mxu0 0.0
    %130 = vmatpush2.xpose.msra.mxu0 0.0
    %131 = vmatprep.subr.mxu0 0.0
    %132 = vmatpush2.xpose.msra.mxu0 0.0
    %133 = vmatprep.mubr.f32.mxu0 0.0
    %134 = vmatmul.mubr.f32.gmra.mxu0 %v65
    %v135 = vpop.f32.mrf.mxu0
    %v136 = vadd.f32 0.0, %v135
    %v137 = vpop.f32.mrf.mxu0
    %138 = vmatprep.mubr.f32.mxu0 0.0
    %139 = vmatmul.mubr.f32.gmra.mxu0 %v66
    %v140 = vpop.f32.mrf.mxu0
    %v141 = vadd.f32 0.0, %v140
    %v142 = vpop.f32.mrf.mxu0
    %143 = vmatprep.mubr.f32.mxu0 0.0
    %144 = vmatmul.mubr.f32.gmra.mxu0 %v67
    %v145 = vpop.f32.mrf.mxu0
    %v146 = vadd.f32 0.0, %v145
    %v147 = vpop.f32.mrf.mxu0
    %148 = vmatprep.mubr.f32.mxu0 0.0
    %149 = vmatmul.mubr.f32.gmra.mxu0 %v68
    %v150 = vpop.f32.mrf.mxu0
    %v151 = vadd.f32 0.0, %v150
    %v152 = vpop.f32.mrf.mxu0
    %153 = vdwg.mxu0
    %v154 = vmul.f32 %v65, %v65
    %v155 = vmul.f32 %v66, %v66
    %v156 = vmul.f32 %v67, %v67
    %v157 = vmul.f32 %v68, %v68
    %158 = vadd.xlane.f32.xlu0 %v154
    %v159 = vpop.xlane.xlu0 %158
    %160 = vadd.xlane.f32.xlu0 %v155
    %v161 = vpop.xlane.xlu0 %160
    %162 = vadd.xlane.f32.xlu0 %v156
    %v163 = vpop.xlane.xlu0 %162
    %164 = vadd.xlane.f32.xlu0 %v157
    %v165 = vpop.xlane.xlu0 %164
    %v166 = vmul.f32 %v159, 0.5
    %v167 = vmul.f32 %v161, 0.5
    %v168 = vmul.f32 %v163, 0.5
    %v169 = vmul.f32 %v165, 0.5
    %170 = vmatprep.subr.mxu0 0.0
    %171 = vmatpush1.xpose.msra.mxu0 0.0
    %172 = vmatprep.subr.mxu0 0.0
    %173 = vmatpush1.xpose.msra.mxu0 0.0
    %174 = vmatprep.subr.mxu0 0.0
    %175 = vmatpush1.xpose.msra.mxu0 0.0
    %176 = vmatprep.subr.mxu0 0.0
    %177 = vmatpush1.xpose.msra.mxu0 0.0
    %178 = vmatprep.subr.mxu0 0.0
    %179 = vmatpush1.xpose.msra.mxu0 0.0
    %180 = vmatprep.subr.mxu0 0.0
    %181 = vmatpush1.xpose.msra.mxu0 0.0
    %182 = vmatprep.subr.mxu0 0.0
    %183 = vmatpush1.xpose.msra.mxu0 0.0
    %184 = vmatprep.subr.mxu0 0.0
    %185 = vmatpush1.xpose.msra.mxu0 0.0
    %186 = vmatprep.subr.mxu0 0.0
    %187 = vmatpush1.xpose.msra.mxu0 0.0
    %188 = vmatprep.subr.mxu0 0.0
    %189 = vmatpush1.xpose.msra.mxu0 0.0
    %190 = vmatprep.subr.mxu0 0.0
    %191 = vmatpush1.xpose.msra.mxu0 0.0
    %192 = vmatprep.subr.mxu0 0.0
    %193 = vmatpush1.xpose.msra.mxu0 0.0
    %194 = vmatprep.subr.mxu0 0.0
    %195 = vmatpush1.xpose.msra.mxu0 %v157
    %196 = vmatprep.subr.mxu0 0.0
    %197 = vmatpush1.xpose.msra.mxu0 %v156
    %198 = vmatprep.subr.mxu0 0.0
    %199 = vmatpush1.xpose.msra.mxu0 %v155
    %200 = vmatprep.subr.mxu0 0.0
    %201 = vmatpush1.xpose.msra.mxu0 %v154
    %202 = vmatprep.subr.mxu0 0.0
    %203 = vmatpush2.xpose.msra.mxu0 0.0
    %204 = vmatprep.subr.mxu0 0.0
    %205 = vmatpush2.xpose.msra.mxu0 0.0
    %206 = vmatprep.subr.mxu0 0.0
    %207 = vmatpush2.xpose.msra.mxu0 0.0
    %208 = vmatprep.subr.mxu0 0.0
    %209 = vmatpush2.xpose.msra.mxu0 0.0
    %210 = vmatprep.subr.mxu0 0.0
    %211 = vmatpush2.xpose.msra.mxu0 0.0
    %212 = vmatprep.subr.mxu0 0.0
    %213 = vmatpush2.xpose.msra.mxu0 0.0
    %214 = vmatprep.subr.mxu0 0.0
    %215 = vmatpush2.xpose.msra.mxu0 0.0
    %216 = vmatprep.subr.mxu0 0.0
    %217 = vmatpush2.xpose.msra.mxu0 0.0
    %218 = vmatprep.subr.mxu0 0.0
    %219 = vmatpush2.xpose.msra.mxu0 0.0
    %220 = vmatprep.subr.mxu0 0.0
    %221 = vmatpush2.xpose.msra.mxu0 0.0
    %222 = vmatprep.subr.mxu0 0.0
    %223 = vmatpush2.xpose.msra.mxu0 0.0
    %224 = vmatprep.subr.mxu0 0.0
    %225 = vmatpush2.xpose.msra.mxu0 0.0
    %226 = vmatprep.subr.mxu0 0.0
    %227 = vmatpush2.xpose.msra.mxu0 0.0
    %228 = vmatprep.subr.mxu0 0.0
    %229 = vmatpush2.xpose.msra.mxu0 0.0
    %230 = vmatprep.subr.mxu0 0.0
    %231 = vmatpush2.xpose.msra.mxu0 0.0
    %232 = vmatprep.subr.mxu0 0.0
    %233 = vmatpush2.xpose.msra.mxu0 0.0
    %234 = vmatprep.mubr.f32.mxu0 0.0
    %235 = vmatmul.mubr.f32.gmra.mxu0 1.0
    %v236 = vpop.f32.mrf.mxu0
    %v237 = vadd.f32 0.0, %v236
    %v238 = vpop.f32.mrf.mxu0
    %239 = vdwg.mxu0
    %v240 = vmul.f32 %v237, 0.5
    %v241 = vsub.f32 %v136, %v166
    %v242 = vlaneseq
    %v243 = vshrl.u32 %v242, 7
    %v244 = vsub.s32 0, %v243
    %v245 = vrot.slane %v240, %v244
    %v246 = vsub.f32 %v241, %v245
    %v247 = vmul.f32 %v246, 1.442695
    %v248 = vpow.pop %v247
    %vm249 = vcmask 64512
    %v250 = vsel %vm249, %v248, 0.0
    %v251 = vrot.slane %v250, 4
    %v252 = vadd.f32 %v250, %v251
    %v253 = vrot.slane %v252, 2
    %v254 = vadd.f32 %v252, %v253
    %v255 = vrot.slane %v254, 1
    %v256 = vadd.f32 %v254, %v255
    %v257 = vmul.f32 %v256, 0.125
    %258 = vadd.xlane.f32.xlu0 %v250
    %v259 = vpop.xlane.xlu0 %258
    %v260 = vmul.f32 %v259, 0.125
    %v261 = vsel %vm249, %v257, 0.0
    %262 = vadd.xlane.f32.xlu0 %v261
    %v263 = vpop.xlane.xlu0 %262
    %v264 = vmul.f32 %v263, 0.125
    %v265 = vsub.f32 %v248, %v257
    %v266 = vsub.f32 %v265, %v260
    %v267 = vadd.f32 %v266, %v264
    %v268 = vadd.f32 %v267, 0.0
    %v269 = vmul.f32 %v267, %v267
    %v270 = vsel %vm249, %v269, 0.0
    %271 = vadd.xlane.f32.xlu0 %v270
    %v272 = vpop.xlane.xlu0 %271
    %v273 = vrot.slane %v272, 4
    %v274 = vadd.f32 %v272, %v273
    %v275 = vrot.slane %v274, 2
    %v276 = vadd.f32 %v274, %v275
    %v277 = vrot.slane %v276, 1
    %v278 = vadd.f32 %v276, %v277
    %s279 = vtos %v278
    %s280 = sadd.f32 %s279, 0.0
    %v281 = vsub.f32 %v141, %v167
    %v282 = vsub.f32 %v281, %v245
    %v283 = vmul.f32 %v282, 1.442695
    %v284 = vpow.pop %v283
    %vm285 = vcmask 130112
    %v286 = vsel %vm285, %v284, 0.0
    %v287 = vrot.slane %v286, 4
    %v288 = vadd.f32 %v286, %v287
    %v289 = vrot.slane %v288, 2
    %v290 = vadd.f32 %v288, %v289
    %v291 = vrot.slane %v290, 1
    %v292 = vadd.f32 %v290, %v291
    %v293 = vmul.f32 %v292, 0.125
    %295 = vrot.lane.b32.xlu0 %v284, 120
    %v296 = vpop.permute.xlu0 %295
    %v298 = vsel %vm249, %v296, 0.0
    %299 = vadd.xlane.f32.xlu0 %v298
    %v300 = vpop.xlane.xlu0 %299
    %v301 = vmul.f32 %v300, 0.125
    %303 = vrot.lane.b32.xlu0 %v293, 120
    %v304 = vpop.permute.xlu0 %303
    %v306 = vsel %vm249, %v304, 0.0
    %307 = vadd.xlane.f32.xlu0 %v306
    %v308 = vpop.xlane.xlu0 %307
    %v309 = vmul.f32 %v308, 0.125
    %v310 = vsub.f32 %v284, %v293
    %v311 = vsub.f32 %v310, %v301
    %v312 = vadd.f32 %v311, %v309
    %314 = vrot.lane.b32.xlu0 %v312, 120
    %v315 = vpop.permute.xlu0 %314
    %v317 = vadd.f32 %v268, %v315
    %v318 = vmul.f32 %v312, %v312
    %320 = vrot.lane.b32.xlu0 %v318, 120
    %v321 = vpop.permute.xlu0 %320
    %v323 = vsel %vm249, %v321, 0.0
    %324 = vadd.xlane.f32.xlu0 %v323
    %v325 = vpop.xlane.xlu0 %324
    %v326 = vrot.slane %v325, 4
    %v327 = vadd.f32 %v325, %v326
    %v328 = vrot.slane %v327, 2
    %v329 = vadd.f32 %v327, %v328
    %v330 = vrot.slane %v329, 1
    %v331 = vadd.f32 %v329, %v330
    %s332 = vtos %v331
    %s333 = sadd.f32 %s280, %s332
    %v334 = vsub.f32 %v146, %v168
    %v335 = vsub.f32 %v334, %v245
    %v336 = vmul.f32 %v335, 1.442695
    %v337 = vpow.pop %v336
    %vm338 = vcmask 195712
    %v339 = vsel %vm338, %v337, 0.0
    %v340 = vrot.slane %v339, 4
    %v341 = vadd.f32 %v339, %v340
    %v342 = vrot.slane %v341, 2
    %v343 = vadd.f32 %v341, %v342
    %v344 = vrot.slane %v343, 1
    %v345 = vadd.f32 %v343, %v344
    %v346 = vmul.f32 %v345, 0.125
    %348 = vrot.lane.b32.xlu0 %v337, 112
    %v349 = vpop.permute.xlu0 %348
    %v351 = vsel %vm249, %v349, 0.0
    %352 = vadd.xlane.f32.xlu0 %v351
    %v353 = vpop.xlane.xlu0 %352
    %v354 = vmul.f32 %v353, 0.125
    %356 = vrot.lane.b32.xlu0 %v346, 112
    %v357 = vpop.permute.xlu0 %356
    %v359 = vsel %vm249, %v357, 0.0
    %360 = vadd.xlane.f32.xlu0 %v359
    %v361 = vpop.xlane.xlu0 %360
    %v362 = vmul.f32 %v361, 0.125
    %v363 = vsub.f32 %v337, %v346
    %v364 = vsub.f32 %v363, %v354
    %v365 = vadd.f32 %v364, %v362
    %367 = vrot.lane.b32.xlu0 %v365, 112
    %v368 = vpop.permute.xlu0 %367
    %v370 = vadd.f32 %v317, %v368
    %v371 = vmul.f32 %v365, %v365
    %373 = vrot.lane.b32.xlu0 %v371, 112
    %v374 = vpop.permute.xlu0 %373
    %v376 = vsel %vm249, %v374, 0.0
    %377 = vadd.xlane.f32.xlu0 %v376
    %v378 = vpop.xlane.xlu0 %377
    %v379 = vrot.slane %v378, 4
    %v380 = vadd.f32 %v378, %v379
    %v381 = vrot.slane %v380, 2
    %v382 = vadd.f32 %v380, %v381
    %v383 = vrot.slane %v382, 1
    %v384 = vadd.f32 %v382, %v383
    %s385 = vtos %v384
    %s386 = sadd.f32 %s333, %s385
    %v387 = vsub.f32 %v151, %v169
    %v388 = vsub.f32 %v387, %v245
    %v389 = vmul.f32 %v388, 1.442695
    %v390 = vpow.pop %v389
    %vm391 = vcmask 261312
    %v392 = vsel %vm391, %v390, 0.0
    %v393 = vrot.slane %v392, 4
    %v394 = vadd.f32 %v392, %v393
    %v395 = vrot.slane %v394, 2
    %v396 = vadd.f32 %v394, %v395
    %v397 = vrot.slane %v396, 1
    %v398 = vadd.f32 %v396, %v397
    %v399 = vmul.f32 %v398, 0.125
    %401 = vrot.lane.b32.xlu0 %v390, 104
    %v402 = vpop.permute.xlu0 %401
    %v404 = vsel %vm249, %v402, 0.0
    %405 = vadd.xlane.f32.xlu0 %v404
    %v406 = vpop.xlane.xlu0 %405
    %v407 = vmul.f32 %v406, 0.125
    %409 = vrot.lane.b32.xlu0 %v399, 104
    %v410 = vpop.permute.xlu0 %409
    %v412 = vsel %vm249, %v410, 0.0
    %413 = vadd.xlane.f32.xlu0 %v412
    %v414 = vpop.xlane.xlu0 %413
    %v415 = vmul.f32 %v414, 0.125
    %v416 = vsub.f32 %v390, %v399
    %v417 = vsub.f32 %v416, %v407
    %v418 = vadd.f32 %v417, %v415
    %420 = vrot.lane.b32.xlu0 %v418, 104
    %v421 = vpop.permute.xlu0 %420
    %v423 = vadd.f32 %v370, %v421
    %v424 = vmul.f32 %v418, %v418
    %426 = vrot.lane.b32.xlu0 %v424, 104
    %v427 = vpop.permute.xlu0 %426
    %v429 = vsel %vm249, %v427, 0.0
    %430 = vadd.xlane.f32.xlu0 %v429
    %v431 = vpop.xlane.xlu0 %430
    %v432 = vrot.slane %v431, 4
    %v433 = vadd.f32 %v431, %v432
    %v434 = vrot.slane %v433, 2
    %v435 = vadd.f32 %v433, %v434
    %v436 = vrot.slane %v435, 1
    %v437 = vadd.f32 %v435, %v436
    %s438 = vtos %v437
    %s439 = sadd.f32 %s386, %s438
    %v440 = vmul.f32 %v423, %v423
    %v441 = vsel %vm249, %v440, 0.0
    %442 = vadd.xlane.f32.xlu0 %v441
    %v443 = vpop.xlane.xlu0 %442
    %v444 = vrot.slane %v443, 4
    %v445 = vadd.f32 %v443, %v444
    %v446 = vrot.slane %v445, 2
    %v447 = vadd.f32 %v445, %v446
    %v448 = vrot.slane %v447, 1
    %v449 = vadd.f32 %v447, %v448
    %s450 = vtos %v449
    %s451 = ssub.f32 %s450, %s439
    %s452 = smul.f32 %s451, 0.5
    %s453 = smul.f32 %s452, 0.020408163
    %v454 = vlaneseq
    %v455 = vand.u32 %v454, 127
    %vm456 = vcmp.eq.s32.totalorder %v455, 0
    %v457 = vstv %s453
    %v458 = vstv %s55
    %v459 = vsel %vm456, %v457, %v458
    %vm460 = vcmask 8192
    %461 = vst.msk [vmem:[#allocation5] sm:$0x1] %vm460, %v459
    // Predicated region
    $region14: #{tpu_custom_call.1} parent=1 // pred_check
      _
    $region15: #{tpu_custom_call.1} parent=1 // pred_check_branch
      %463 = sbr.rel (0) target = $region17
    $region16: #{tpu_custom_call.1} parent=1 // pred_region
      %s465 = ssub.s32 16, 16
      %466 = vsyncadd [#allocation4], %s465
      %s468 = sshll.u32 [#allocation5], 4
      %s469 = int_to_ptr.vmem [resolvable:$true] %s468
      %471 = dma.vmem_to_hbm [thread:$0]  %s469, 16, %s2, [#allocation4]
    $region17: #{tpu_custom_call.1} parent=1 // pred_fallthru
      _
    // Predicated region
    $region18: #{tpu_custom_call.1} parent=1 // pred_check
      _
    $region19: #{tpu_custom_call.1} parent=1 // pred_check_branch
      %473 = sbr.rel (0) target = $region21
    $region20: #{tpu_custom_call.1} parent=1 // pred_region
      %474 = dma.done [#allocation4], 16
    $region21: #{tpu_custom_call.1} parent=1 // pred_fallthru
      _
    %475 = vsyncpa [#allocation3], 1
    %476 = vsyncpa [#allocation4], 1

</llo_original>
